<compile_context>
chip_gen: v5e
topology: v5e:2x2
jax: 0.10.0
libtpu: 0.0.40
codegen_flags: <defaults>
</compile_context>

<pallas_src>
import jax
import jax.numpy as jnp
from jax.experimental import pallas as pl
from jax.experimental.pallas import tpu as pltpu


def deeponet_kernel(txT_ref, bxT_ref,
                    w1T_ref, b1_ref,
                    w2T_ref, b2_ref,
                    w3T_ref, b3_ref,
                    w4T_ref, b4_ref,
                    mT_ref, v_ref,
                    out_ref):
    # Feature-major layout: activations are [features, batch]; batch -> lanes.
    tf = txT_ref.shape[0]

    # ---- trunk layer 1: K = trunk_features is tiny (2) -> VPU outer-product MACs ----
    if tf <= 8:
        w1t = w1T_ref[...]                                     # (C, tf)
        z = b1_ref[...] + w1t[:, 0:1] * txT_ref[0:1, :]        # (C, bt)
        for t in range(1, tf):
            z = z + w1t[:, t:t + 1] * txT_ref[t:t + 1, :]
    else:
        z = jnp.dot(w1T_ref[...], txT_ref[...],
                    preferred_element_type=jnp.float32) + b1_ref[...]
    h = jnp.tanh(z)                                            # (C, bt)

    # ---- trunk layers 2..4: (C,C)@(C,bt) MXU matmuls (full-lane N) + tanh ----
    h = jnp.tanh(jnp.dot(w2T_ref[...], h,
                         preferred_element_type=jnp.float32) + b2_ref[...])
    h = jnp.tanh(jnp.dot(w3T_ref[...], h,
                         preferred_element_type=jnp.float32) + b3_ref[...])
    h = jnp.tanh(jnp.dot(w4T_ref[...], h,
                         preferred_element_type=jnp.float32) + b4_ref[...])

    # ---- fused branch/trunk combine (exact rewrite of the P=1000 contraction) ----
    bxT = bxT_ref[...]                                         # (bf, bt)
    g = jnp.dot(mT_ref[...], bxT,
                preferred_element_type=jnp.float32)            # (C, bt)
    s = jnp.sum(g * h, axis=0, keepdims=True)                  # (1, bt) sublane reduce
    bias = jnp.sum(bxT * v_ref[...], axis=0, keepdims=True)    # (1, bt) sublane reduce
    out_ref[...] = s + bias                                    # lane-dense store


def _pick_batch_tile(B, batch_tile):
    """Tile along the batch (lane) axis: multiple of 128, or the full extent B."""
    if batch_tile is not None:
        bt = int(batch_tile)
        if bt >= B:
            return B
        return max(128, (bt // 128) * 128)
    if B < 256:
        return B                                    # single grid step
    # >=2 grid steps for v7x megacore, tiles up to 2048 lanes.
    return min(2048, max(128, ((B // 2) // 128) * 128))


def deeponet_forward(branch_input, trunk_input, params, *, batch_tile=None):
    (wb, w1, b1, w2, b2, w3, b3, w4, b4, w5, b5, lw) = params
    B, bf = branch_input.shape
    _, tf = trunk_input.shape
    C = w1.shape[1]

    # ---- fused combine weights (exact bilinear-form rewrite, hoistable) ----
    wl = wb * lw                          # (bf, P)
    mT = w5 @ wl.T                        # (C, bf)  == ((wb*lw) @ w5.T).T
    v = wl @ b5.T                         # (bf, 1)

    # ---- feature-major weights / biases (tiny, layout plumbing) ----
    w1T, w2T, w3T, w4T = w1.T, w2.T, w3.T, w4.T          # (C, tf), (C, C) x3
    b1c, b2c, b3c, b4c = b1.T, b2.T, b3.T, b4.T          # (C, 1)

    # ---- feature-major inputs: batch goes to the lane axis ----
    txT = trunk_input.T                   # (tf, B)
    bxT = branch_input.T                  # (bf, B)

    bt = _pick_batch_tile(B, batch_tile)
    grid = (pl.cdiv(B, bt),)              # partial last block handled by Pallas

    def data_map(i):
        return (0, i)

    def const_map(i):
        return (0, 0)                      # constant block index -> fetched once

    out = pl.pallas_call(
        deeponet_kernel,
        out_shape=jax.ShapeDtypeStruct((1, B), jnp.float32),
        grid_spec=pltpu.PrefetchScalarGridSpec(
            num_scalar_prefetch=0,
            grid=grid,
            in_specs=[
                pl.BlockSpec((tf, bt), data_map),    # trunk_input^T tile
                pl.BlockSpec((bf, bt), data_map),    # branch_input^T tile
                pl.BlockSpec((C, tf), const_map),    # W1^T
                pl.BlockSpec((C, 1), const_map),     # b1
                pl.BlockSpec((C, C), const_map),     # W2^T
                pl.BlockSpec((C, 1), const_map),     # b2
                pl.BlockSpec((C, C), const_map),     # W3^T
                pl.BlockSpec((C, 1), const_map),     # b3
                pl.BlockSpec((C, C), const_map),     # W4^T
                pl.BlockSpec((C, 1), const_map),     # b4
                pl.BlockSpec((C, bf), const_map),    # M^T  (fused (Wb*lw) W5^T)
                pl.BlockSpec((bf, 1), const_map),    # v    (fused (Wb*lw) b5^T)
            ],
            out_specs=pl.BlockSpec((1, bt), data_map),   # lane-dense output row
        ),
        compiler_params=pltpu.CompilerParams(
            dimension_semantics=("parallel",)),
    )(txT, bxT, w1T, b1c, w2T, b2c, w3T, b3c, w4T, b4c, mT, v)

    # (1, B) row -> (B, 1) column: free metadata reshape, matches PyTorch output.
    return out.reshape(B, 1)


def deeponet_reference(branch_input, trunk_input, params):
    """Pure-JAX reference, mirrors the PyTorch forward exactly (unfused, P=1000 path)."""
    (wb, w1, b1, w2, b2, w3, b3, w4, b4, w5, b5, lw) = params
    branch = branch_input @ wb
    h = jnp.tanh(trunk_input @ w1 + b1)
    h = jnp.tanh(h @ w2 + b2)
    h = jnp.tanh(h @ w3 + b3)
    h = jnp.tanh(h @ w4 + b4)
    trunk = h @ w5 + b5
    return jnp.sum(branch * trunk * lw, axis=1, keepdims=True)


def init_params(key, branch_features, trunk_features, common_features, p=1000):
    """Deterministic synthetic init. Weights are stored [in, out] (pre-transposed)."""
    ks = jax.random.split(key, 12)

    def w(k, i, o, scale):
        return jax.random.normal(k, (i, o), jnp.float32) * scale

    def b(k, o):
        return jax.random.normal(k, (1, o), jnp.float32) * 0.01

    wb = w(ks[0], branch_features, p, 1.0 / jnp.sqrt(branch_features))
    w1 = w(ks[1], trunk_features, common_features, 1.0 / jnp.sqrt(trunk_features))
    b1 = b(ks[2], common_features)
    w2 = w(ks[3], common_features, common_features, 1.0 / jnp.sqrt(common_features))
    b2 = b(ks[4], common_features)
    w3 = w(ks[5], common_features, common_features, 1.0 / jnp.sqrt(common_features))
    b3 = b(ks[6], common_features)
    w4 = w(ks[7], common_features, common_features, 1.0 / jnp.sqrt(common_features))
    b4 = b(ks[8], common_features)
    w5 = w(ks[9], common_features, p, 1.0 / jnp.sqrt(common_features))
    b5 = b(ks[10], p)
    lw = jax.random.normal(ks[11], (1, p), jnp.float32)   # last_layer_weights ~ randn(1000)
    return (wb, w1, b1, w2, b2, w3, b3, w4, b4, w5, b5, lw)


if __name__ == "__main__":
    # Small shapes consistent with the module:
    #   branch_features=32 (sensor samples), trunk_features=2 (x,y coords for laplace2D),
    #   common_features=32, hidden width P=1000, batch=16.
    B = 16
    branch_features = 32
    trunk_features = 2
    common_features = 32

    key = jax.random.PRNGKey(0)
    kp, kb, kt = jax.random.split(key, 3)
    params = init_params(kp, branch_features, trunk_features, common_features)

    branch_input = jax.random.normal(kb, (B, branch_features), jnp.float32)
    trunk_input = jax.random.normal(kt, (B, trunk_features), jnp.float32)

    # jit the whole forward so the M/v precompute + input transposes compile
    # together with the pallas_call (per review); they are also hoistable if
    # params are reused across calls.
    fwd = jax.jit(deeponet_forward)
    out = jax.block_until_ready(fwd(branch_input, trunk_input, params))

    ref = deeponet_reference(branch_input, trunk_input, params)
    assert out.shape == (B, 1)
    # Fused combine is an exact algebraic rewrite but changes the f32 summation
    # order over the 1000-wide axis, so allow a slightly looser tolerance.
    assert jnp.allclose(out, ref, rtol=1e-3, atol=1e-3), (out, ref)

    print("KERNEL_OK")
</pallas_src>

<mosaic_0001>
module attributes {stable_mosaic.version = 11 : i64} {
  func.func @deeponet_kernel(%arg0: i32, %arg1: memref<2x16xf32, #tpu.memory_space<vmem>>, %arg2: memref<32x16xf32, #tpu.memory_space<vmem>>, %arg3: memref<32x2xf32, #tpu.memory_space<vmem>>, %arg4: memref<32x1xf32, #tpu.memory_space<vmem>>, %arg5: memref<32x32xf32, #tpu.memory_space<vmem>>, %arg6: memref<32x1xf32, #tpu.memory_space<vmem>>, %arg7: memref<32x32xf32, #tpu.memory_space<vmem>>, %arg8: memref<32x1xf32, #tpu.memory_space<vmem>>, %arg9: memref<32x32xf32, #tpu.memory_space<vmem>>, %arg10: memref<32x1xf32, #tpu.memory_space<vmem>>, %arg11: memref<32x32xf32, #tpu.memory_space<vmem>>, %arg12: memref<32x1xf32, #tpu.memory_space<vmem>>, %arg13: memref<1x16xf32, #tpu.memory_space<vmem>>) attributes {dimension_semantics = [#tpu.dimension_semantics<parallel>], iteration_bounds = array<i64: 1>, scalar_prefetch = 0 : i64, scratch_operands = 0 : i64, tpu.core_type = #tpu.core_type<tc>, window_params = [{transform_indices = @transform_0, window_bounds = array<i64: 2, 16>}, {transform_indices = @transform_1, window_bounds = array<i64: 32, 16>}, {pipeline_mode = #tpu.pipeline_mode<synchronous>, transform_indices = @transform_2, window_bounds = array<i64: 32, 2>}, {pipeline_mode = #tpu.pipeline_mode<synchronous>, transform_indices = @transform_3, window_bounds = array<i64: 32, 1>}, {pipeline_mode = #tpu.pipeline_mode<synchronous>, transform_indices = @transform_4, window_bounds = array<i64: 32, 32>}, {pipeline_mode = #tpu.pipeline_mode<synchronous>, transform_indices = @transform_5, window_bounds = array<i64: 32, 1>}, {pipeline_mode = #tpu.pipeline_mode<synchronous>, transform_indices = @transform_6, window_bounds = array<i64: 32, 32>}, {pipeline_mode = #tpu.pipeline_mode<synchronous>, transform_indices = @transform_7, window_bounds = array<i64: 32, 1>}, {pipeline_mode = #tpu.pipeline_mode<synchronous>, transform_indices = @transform_8, window_bounds = array<i64: 32, 32>}, {pipeline_mode = #tpu.pipeline_mode<synchronous>, transform_indices = @transform_9, window_bounds = array<i64: 32, 1>}, {pipeline_mode = #tpu.pipeline_mode<synchronous>, transform_indices = @transform_10, window_bounds = array<i64: 32, 32>}, {pipeline_mode = #tpu.pipeline_mode<synchronous>, transform_indices = @transform_11, window_bounds = array<i64: 32, 1>}, {transform_indices = @transform_12, window_bounds = array<i64: 1, 16>}]} {
    %c0 = arith.constant 0 : index
    %c0_0 = arith.constant 0 : index
    %0 = vector.load %arg3[%c0, %c0_0] : memref<32x2xf32, #tpu.memory_space<vmem>>, vector<32x2xf32>
    %c0_1 = arith.constant 0 : index
    %c0_2 = arith.constant 0 : index
    %1 = vector.load %arg4[%c0_1, %c0_2] : memref<32x1xf32, #tpu.memory_space<vmem>>, vector<32x1xf32>
    %2 = vector.extract_strided_slice %0 {offsets = [0, 0], sizes = [32, 1], strides = [1, 1]} : vector<32x2xf32> to vector<32x1xf32>
    %c0_3 = arith.constant 0 : index
    %c0_4 = arith.constant 0 : index
    %3 = vector.load %arg1[%c0_3, %c0_4] : memref<2x16xf32, #tpu.memory_space<vmem>>, vector<1x16xf32>
    %4 = vector.broadcast %2 : vector<32x1xf32> to vector<32x16xf32>
    %5 = vector.broadcast %3 : vector<1x16xf32> to vector<32x16xf32>
    %6 = arith.mulf %4, %5 : vector<32x16xf32>
    %7 = vector.broadcast %1 : vector<32x1xf32> to vector<32x16xf32>
    %8 = arith.addf %7, %6 : vector<32x16xf32>
    %9 = vector.extract_strided_slice %0 {offsets = [0, 1], sizes = [32, 1], strides = [1, 1]} : vector<32x2xf32> to vector<32x1xf32>
    %c1 = arith.constant 1 : index
    %c0_5 = arith.constant 0 : index
    %10 = vector.load %arg1[%c1, %c0_5] : memref<2x16xf32, #tpu.memory_space<vmem>>, vector<1x16xf32>
    %11 = vector.broadcast %9 : vector<32x1xf32> to vector<32x16xf32>
    %12 = vector.broadcast %10 : vector<1x16xf32> to vector<32x16xf32>
    %13 = arith.mulf %11, %12 : vector<32x16xf32>
    %14 = arith.addf %8, %13 : vector<32x16xf32>
    %15 = math.tanh %14 : vector<32x16xf32>
    %c0_6 = arith.constant 0 : index
    %c0_7 = arith.constant 0 : index
    %16 = vector.load %arg5[%c0_6, %c0_7] : memref<32x32xf32, #tpu.memory_space<vmem>>, vector<32x32xf32>
    %cst = arith.constant dense<0.000000e+00> : vector<32x16xf32>
    %17 = tpu.matmul %16, %15, %cst {dimension_numbers = #tpu.dot_dimension_numbers<[1], [0], [0], [1], [0, 0, 1, 1], [], []>} : vector<32x32xf32>, vector<32x16xf32>, vector<32x16xf32> -> vector<32x16xf32>
    %c0_8 = arith.constant 0 : index
    %c0_9 = arith.constant 0 : index
    %18 = vector.load %arg6[%c0_8, %c0_9] : memref<32x1xf32, #tpu.memory_space<vmem>>, vector<32x1xf32>
    %19 = vector.broadcast %18 : vector<32x1xf32> to vector<32x16xf32>
    %20 = arith.addf %17, %19 : vector<32x16xf32>
    %21 = math.tanh %20 : vector<32x16xf32>
    %c0_10 = arith.constant 0 : index
    %c0_11 = arith.constant 0 : index
    %22 = vector.load %arg7[%c0_10, %c0_11] : memref<32x32xf32, #tpu.memory_space<vmem>>, vector<32x32xf32>
    %cst_12 = arith.constant dense<0.000000e+00> : vector<32x16xf32>
    %23 = tpu.matmul %22, %21, %cst_12 {dimension_numbers = #tpu.dot_dimension_numbers<[1], [0], [0], [1], [0, 0, 1, 1], [], []>} : vector<32x32xf32>, vector<32x16xf32>, vector<32x16xf32> -> vector<32x16xf32>
    %c0_13 = arith.constant 0 : index
    %c0_14 = arith.constant 0 : index
    %24 = vector.load %arg8[%c0_13, %c0_14] : memref<32x1xf32, #tpu.memory_space<vmem>>, vector<32x1xf32>
    %25 = vector.broadcast %24 : vector<32x1xf32> to vector<32x16xf32>
    %26 = arith.addf %23, %25 : vector<32x16xf32>
    %27 = math.tanh %26 : vector<32x16xf32>
    %c0_15 = arith.constant 0 : index
    %c0_16 = arith.constant 0 : index
    %28 = vector.load %arg9[%c0_15, %c0_16] : memref<32x32xf32, #tpu.memory_space<vmem>>, vector<32x32xf32>
    %cst_17 = arith.constant dense<0.000000e+00> : vector<32x16xf32>
    %29 = tpu.matmul %28, %27, %cst_17 {dimension_numbers = #tpu.dot_dimension_numbers<[1], [0], [0], [1], [0, 0, 1, 1], [], []>} : vector<32x32xf32>, vector<32x16xf32>, vector<32x16xf32> -> vector<32x16xf32>
    %c0_18 = arith.constant 0 : index
    %c0_19 = arith.constant 0 : index
    %30 = vector.load %arg10[%c0_18, %c0_19] : memref<32x1xf32, #tpu.memory_space<vmem>>, vector<32x1xf32>
    %31 = vector.broadcast %30 : vector<32x1xf32> to vector<32x16xf32>
    %32 = arith.addf %29, %31 : vector<32x16xf32>
    %33 = math.tanh %32 : vector<32x16xf32>
    %c0_20 = arith.constant 0 : index
    %c0_21 = arith.constant 0 : index
    %34 = vector.load %arg2[%c0_20, %c0_21] : memref<32x16xf32, #tpu.memory_space<vmem>>, vector<32x16xf32>
    %c0_22 = arith.constant 0 : index
    %c0_23 = arith.constant 0 : index
    %35 = vector.load %arg11[%c0_22, %c0_23] : memref<32x32xf32, #tpu.memory_space<vmem>>, vector<32x32xf32>
    %cst_24 = arith.constant dense<0.000000e+00> : vector<32x16xf32>
    %36 = tpu.matmul %35, %34, %cst_24 {dimension_numbers = #tpu.dot_dimension_numbers<[1], [0], [0], [1], [0, 0, 1, 1], [], []>} : vector<32x32xf32>, vector<32x16xf32>, vector<32x16xf32> -> vector<32x16xf32>
    %37 = arith.mulf %36, %33 : vector<32x16xf32>
    %cst_25 = arith.constant dense<0.000000e+00> : vector<16xf32>
    %38 = vector.multi_reduction <add>, %37, %cst_25 [0] : vector<32x16xf32> to vector<16xf32>
    %39 = vector.shape_cast %38 : vector<16xf32> to vector<1x16xf32>
    %c0_26 = arith.constant 0 : index
    %c0_27 = arith.constant 0 : index
    %40 = vector.load %arg12[%c0_26, %c0_27] : memref<32x1xf32, #tpu.memory_space<vmem>>, vector<32x1xf32>
    %41 = vector.broadcast %40 : vector<32x1xf32> to vector<32x16xf32>
    %42 = arith.mulf %34, %41 : vector<32x16xf32>
    %cst_28 = arith.constant dense<0.000000e+00> : vector<16xf32>
    %43 = vector.multi_reduction <add>, %42, %cst_28 [0] : vector<32x16xf32> to vector<16xf32>
    %44 = vector.shape_cast %43 : vector<16xf32> to vector<1x16xf32>
    %45 = arith.addf %39, %44 : vector<1x16xf32>
    %c0_29 = arith.constant 0 : index
    %c0_30 = arith.constant 0 : index
    %46 = vector.load %arg13[%c0_29, %c0_30] : memref<1x16xf32, #tpu.memory_space<vmem>>, vector<1x16xf32>
    tpu.vector_store %arg13[%c0_29, %c0_30], %45 {strides = array<i32>} : memref<1x16xf32, #tpu.memory_space<vmem>>, vector<1x16xf32>,
    return
  }
  func.func @transform_0(%arg0: i32) -> (i32, i32) {
    %c0_i32 = arith.constant 0 : i32
    %c0_i32_0 = arith.constant 0 : i32
    return %c0_i32, %arg0 : i32, i32
  }
  func.func @transform_1(%arg0: i32) -> (i32, i32) {
    %c0_i32 = arith.constant 0 : i32
    %c0_i32_0 = arith.constant 0 : i32
    return %c0_i32, %arg0 : i32, i32
  }
  func.func @transform_2(%arg0: i32) -> (i32, i32) {
    %c0_i32 = arith.constant 0 : i32
    %c0_i32_0 = arith.constant 0 : i32
    %c0_i32_1 = arith.constant 0 : i32
    return %c0_i32, %c0_i32_0 : i32, i32
  }
  func.func @transform_3(%arg0: i32) -> (i32, i32) {
    %c0_i32 = arith.constant 0 : i32
    %c0_i32_0 = arith.constant 0 : i32
    %c0_i32_1 = arith.constant 0 : i32
    return %c0_i32, %c0_i32_0 : i32, i32
  }
  func.func @transform_4(%arg0: i32) -> (i32, i32) {
    %c0_i32 = arith.constant 0 : i32
    %c0_i32_0 = arith.constant 0 : i32
    %c0_i32_1 = arith.constant 0 : i32
    return %c0_i32, %c0_i32_0 : i32, i32
  }
  func.func @transform_5(%arg0: i32) -> (i32, i32) {
    %c0_i32 = arith.constant 0 : i32
    %c0_i32_0 = arith.constant 0 : i32
    %c0_i32_1 = arith.constant 0 : i32
    return %c0_i32, %c0_i32_0 : i32, i32
  }
  func.func @transform_6(%arg0: i32) -> (i32, i32) {
    %c0_i32 = arith.constant 0 : i32
    %c0_i32_0 = arith.constant 0 : i32
    %c0_i32_1 = arith.constant 0 : i32
    return %c0_i32, %c0_i32_0 : i32, i32
  }
  func.func @transform_7(%arg0: i32) -> (i32, i32) {
    %c0_i32 = arith.constant 0 : i32
    %c0_i32_0 = arith.constant 0 : i32
    %c0_i32_1 = arith.constant 0 : i32
    return %c0_i32, %c0_i32_0 : i32, i32
  }
  func.func @transform_8(%arg0: i32) -> (i32, i32) {
    %c0_i32 = arith.constant 0 : i32
    %c0_i32_0 = arith.constant 0 : i32
    %c0_i32_1 = arith.constant 0 : i32
    return %c0_i32, %c0_i32_0 : i32, i32
  }
  func.func @transform_9(%arg0: i32) -> (i32, i32) {
    %c0_i32 = arith.constant 0 : i32
    %c0_i32_0 = arith.constant 0 : i32
    %c0_i32_1 = arith.constant 0 : i32
    return %c0_i32, %c0_i32_0 : i32, i32
  }
  func.func @transform_10(%arg0: i32) -> (i32, i32) {
    %c0_i32 = arith.constant 0 : i32
    %c0_i32_0 = arith.constant 0 : i32
    %c0_i32_1 = arith.constant 0 : i32
    return %c0_i32, %c0_i32_0 : i32, i32
  }
  func.func @transform_11(%arg0: i32) -> (i32, i32) {
    %c0_i32 = arith.constant 0 : i32
    %c0_i32_0 = arith.constant 0 : i32
    %c0_i32_1 = arith.constant 0 : i32
    return %c0_i32, %c0_i32_0 : i32, i32
  }
  func.func @transform_12(%arg0: i32) -> (i32, i32) {
    %c0_i32 = arith.constant 0 : i32
    %c0_i32_0 = arith.constant 0 : i32
    return %c0_i32, %arg0 : i32, i32
  }
}

</mosaic_0001>

<llo_original>
// kernel: deeponet_forward.1
$region0: #{deeponet_forward.1}
  #allocation0 [shape = 'u32[]', space=smem, size = 0x4, offset = 0x4, fixed_abs, tag = 'smem constant byte address 0x4 - core index']
  #allocation1 [shape = 'u32[72,128]{1,0:T(1,128)}', space=vmem, size = 0x9000, scoped, tag = 'internal scratch']
  %s0 = inlined_call_operand.vmem [shape: f32[2,16], index: 0, kind: input, shape index: {}]
  %s1 = inlined_call_operand.vmem [shape: f32[32,16], index: 1, kind: input, shape index: {}]
  %s2 = inlined_call_operand.vmem [shape: f32[32,2], index: 2, kind: input, shape index: {}]
  %s3 = inlined_call_operand.vmem [shape: f32[32,1], index: 3, kind: input, shape index: {}]
  %s4 = inlined_call_operand.vmem [shape: f32[32,32], index: 4, kind: input, shape index: {}]
  %s5 = inlined_call_operand.vmem [shape: f32[32,1], index: 5, kind: input, shape index: {}]
  %s6 = inlined_call_operand.vmem [shape: f32[32,32], index: 6, kind: input, shape index: {}]
  %s7 = inlined_call_operand.vmem [shape: f32[32,1], index: 7, kind: input, shape index: {}]
  %s8 = inlined_call_operand.vmem [shape: f32[32,32], index: 8, kind: input, shape index: {}]
  %s9 = inlined_call_operand.vmem [shape: f32[32,1], index: 9, kind: input, shape index: {}]
  %s10 = inlined_call_operand.vmem [shape: f32[32,32], index: 10, kind: input, shape index: {}]
  %s11 = inlined_call_operand.vmem [shape: f32[32,1], index: 11, kind: input, shape index: {}]
  %s12 = inlined_call_operand.hbm [shape: f32[1,16], index: 12, kind: output, shape index: {}]
  %s13 = sld [smem:[#allocation0]]
  $region58: #{deeponet_forward.1} parent=0
    _
  %s15 = ssub.s32 1, %s13
  %s16 = scalar_select 0, %s15, %s13
  $region1: #{deeponet_forward.1} parent=0
    #allocation2 [shape = 'u8[512]{0}', space=vmem, size = 0x400, scoped, tag = 'output window, operand 0, single buffered']
    #allocation3 [shape = 's32[1]{0}', space=sflag, size = 0x4, scoped, tag = 'scoped memory for deeponet_forward.1']
    %17 = vsyncpa [#allocation3], 0
    // Predicated region
    $region2: #{deeponet_forward.1} parent=1 // pred_check
      _
    $region3: #{deeponet_forward.1} parent=1 // pred_check_branch
      %19 = sbr.rel (0) target = $region5
    $region4: #{deeponet_forward.1} parent=1 // pred_region
      _
    $region5: #{deeponet_forward.1} parent=1 // pred_fallthru
      _
    // Predicated region
    $region6: #{deeponet_forward.1} parent=1 // pred_check
      _
    $region7: #{deeponet_forward.1} parent=1 // pred_check_branch
      %21 = sbr.rel (0) target = $region9
    $region8: #{deeponet_forward.1} parent=1 // pred_region
      _
    $region9: #{deeponet_forward.1} parent=1 // pred_fallthru
      _
    // Predicated region
    $region10: #{deeponet_forward.1} parent=1 // pred_check
      _
    $region11: #{deeponet_forward.1} parent=1 // pred_check_branch
      %23 = sbr.rel (0) target = $region13
    $region12: #{deeponet_forward.1} parent=1 // pred_region
      _
    $region13: #{deeponet_forward.1} parent=1 // pred_fallthru
      _
    // Predicated region
    $region14: #{deeponet_forward.1} parent=1 // pred_check
      _
    $region15: #{deeponet_forward.1} parent=1 // pred_check_branch
      %25 = sbr.rel (0) target = $region17
    $region16: #{deeponet_forward.1} parent=1 // pred_region
      _
    $region17: #{deeponet_forward.1} parent=1 // pred_fallthru
      _
    // Predicated region
    $region18: #{deeponet_forward.1} parent=1 // pred_check
      _
    $region19: #{deeponet_forward.1} parent=1 // pred_check_branch
      %27 = sbr.rel (0) target = $region21
    $region20: #{deeponet_forward.1} parent=1 // pred_region
      _
    $region21: #{deeponet_forward.1} parent=1 // pred_fallthru
      _
    // Predicated region
    $region22: #{deeponet_forward.1} parent=1 // pred_check
      _
    $region23: #{deeponet_forward.1} parent=1 // pred_check_branch
      %29 = sbr.rel (0) target = $region25
    $region24: #{deeponet_forward.1} parent=1 // pred_region
      _
    $region25: #{deeponet_forward.1} parent=1 // pred_fallthru
      _
    // Predicated region
    $region26: #{deeponet_forward.1} parent=1 // pred_check
      _
    $region27: #{deeponet_forward.1} parent=1 // pred_check_branch
      %31 = sbr.rel (0) target = $region29
    $region28: #{deeponet_forward.1} parent=1 // pred_region
      _
    $region29: #{deeponet_forward.1} parent=1 // pred_fallthru
      _
    // Predicated region
    $region30: #{deeponet_forward.1} parent=1 // pred_check
      _
    $region31: #{deeponet_forward.1} parent=1 // pred_check_branch
      %33 = sbr.rel (0) target = $region33
    $region32: #{deeponet_forward.1} parent=1 // pred_region
      _
    $region33: #{deeponet_forward.1} parent=1 // pred_fallthru
      _
    // Predicated region
    $region34: #{deeponet_forward.1} parent=1 // pred_check
      _
    $region35: #{deeponet_forward.1} parent=1 // pred_check_branch
      %35 = sbr.rel (0) target = $region37
    $region36: #{deeponet_forward.1} parent=1 // pred_region
      _
    $region37: #{deeponet_forward.1} parent=1 // pred_fallthru
      _
    // Predicated region
    $region38: #{deeponet_forward.1} parent=1 // pred_check
      _
    $region39: #{deeponet_forward.1} parent=1 // pred_check_branch
      %37 = sbr.rel (0) target = $region41
    $region40: #{deeponet_forward.1} parent=1 // pred_region
      _
    $region41: #{deeponet_forward.1} parent=1 // pred_fallthru
      _
    // Predicated region
    $region42: #{deeponet_forward.1} parent=1 // pred_check
      _
    $region43: #{deeponet_forward.1} parent=1 // pred_check_branch
      %39 = sbr.rel (0) target = $region45
    $region44: #{deeponet_forward.1} parent=1 // pred_region
      _
    $region45: #{deeponet_forward.1} parent=1 // pred_fallthru
      _
    // Predicated region
    $region46: #{deeponet_forward.1} parent=1 // pred_check
      _
    $region47: #{deeponet_forward.1} parent=1 // pred_check_branch
      %41 = sbr.rel (0) target = $region49
    $region48: #{deeponet_forward.1} parent=1 // pred_region
      _
    $region49: #{deeponet_forward.1} parent=1 // pred_fallthru
      _
    %v42 = vld [vmem:[%s2] sm:$0xff]
    %v43 = vld [vmem:[%s2 + $0x8] sm:$0xff]
    %v44 = vld [vmem:[%s2 + $0x10] sm:$0xff]
    %v45 = vld [vmem:[%s2 + $0x18] sm:$0xff]
    %v46 = vld [vmem:[%s3] sm:$0xff]
    %v47 = vld [vmem:[%s3 + $0x8] sm:$0xff]
    %v48 = vld [vmem:[%s3 + $0x10] sm:$0xff]
    %v49 = vld [vmem:[%s3 + $0x18] sm:$0xff]
    %v50 = vld [vmem:[%s0] sm:$0x1]
    %52 = vset.pattern.permute.xlu0 0
    %53 = vperm.xlu0 %52, %v42
    %v54 = vpop.permute.xlu0 %53
    %57 = vset.pattern.permute.xlu0 0
    %58 = vperm.xlu0 %57, %v43
    %v59 = vpop.permute.xlu0 %58
    %62 = vset.pattern.permute.xlu0 0
    %63 = vperm.xlu0 %62, %v44
    %v64 = vpop.permute.xlu0 %63
    %67 = vset.pattern.permute.xlu0 0
    %68 = vperm.xlu0 %67, %v45
    %v69 = vpop.permute.xlu0 %68
    %v71 = vperm.slane %v50, 0
    %v72 = vmul.f32 %v54, %v71
    %v73 = vmul.f32 %v59, %v71
    %v74 = vmul.f32 %v64, %v71
    %v75 = vmul.f32 %v69, %v71
    %77 = vset.pattern.permute.xlu0 0
    %78 = vperm.xlu0 %77, %v46
    %v79 = vpop.permute.xlu0 %78
    %82 = vset.pattern.permute.xlu0 0
    %83 = vperm.xlu0 %82, %v47
    %v84 = vpop.permute.xlu0 %83
    %87 = vset.pattern.permute.xlu0 0
    %88 = vperm.xlu0 %87, %v48
    %v89 = vpop.permute.xlu0 %88
    %92 = vset.pattern.permute.xlu0 0
    %93 = vperm.xlu0 %92, %v49
    %v94 = vpop.permute.xlu0 %93
    %v96 = vadd.f32 %v79, %v72
    %v97 = vadd.f32 %v84, %v73
    %v98 = vadd.f32 %v89, %v74
    %v99 = vadd.f32 %v94, %v75
    %v100 = vld [vmem:[%s0 + $0x1] sm:$0x1]
    %101 = vset.pattern.permute.xlu0 1
    %102 = vperm.xlu0 %101, %v42
    %v103 = vpop.permute.xlu0 %102
    %105 = vset.pattern.permute.xlu0 1
    %106 = vperm.xlu0 %105, %v43
    %v107 = vpop.permute.xlu0 %106
    %109 = vset.pattern.permute.xlu0 1
    %110 = vperm.xlu0 %109, %v44
    %v111 = vpop.permute.xlu0 %110
    %113 = vset.pattern.permute.xlu0 1
    %114 = vperm.xlu0 %113, %v45
    %v115 = vpop.permute.xlu0 %114
    %v117 = vperm.slane %v100, 0
    %v118 = vmul.f32 %v103, %v117
    %v119 = vmul.f32 %v107, %v117
    %v120 = vmul.f32 %v111, %v117
    %v121 = vmul.f32 %v115, %v117
    %v122 = vadd.f32 %v96, %v118
    %v123 = vadd.f32 %v97, %v119
    %v124 = vadd.f32 %v98, %v120
    %v125 = vadd.f32 %v99, %v121
    %v126 = vtanh.pop %v122
    %v127 = vtanh.pop %v123
    %v128 = vtanh.pop %v124
    %v129 = vtanh.pop %v125
    %v130 = vld [vmem:[%s4] sm:$0xff]
    %v131 = vld [vmem:[%s4 + $0x8] sm:$0xff]
    %v132 = vld [vmem:[%s4 + $0x10] sm:$0xff]
    %v133 = vld [vmem:[%s4 + $0x18] sm:$0xff]
    %v134 = vld [vmem:[%s5] sm:$0xff]
    %v135 = vld [vmem:[%s5 + $0x8] sm:$0xff]
    %v136 = vld [vmem:[%s5 + $0x10] sm:$0xff]
    %v137 = vld [vmem:[%s5 + $0x18] sm:$0xff]
    %139 = vset.pattern.permute.xlu0 0
    %140 = vperm.xlu0 %139, %v134
    %v141 = vpop.permute.xlu0 %140
    %144 = vset.pattern.permute.xlu0 0
    %145 = vperm.xlu0 %144, %v135
    %v146 = vpop.permute.xlu0 %145
    %149 = vset.pattern.permute.xlu0 0
    %150 = vperm.xlu0 %149, %v136
    %v151 = vpop.permute.xlu0 %150
    %154 = vset.pattern.permute.xlu0 0
    %155 = vperm.xlu0 %154, %v137
    %v156 = vpop.permute.xlu0 %155
    %vm158 = vcmask 261120
    %v160 = vsel %vm158, %v130, 0
    %v163 = vsel %vm158, %v131, 0
    %v166 = vsel %vm158, %v132, 0
    %v169 = vsel %vm158, %v133, 0
    %171 = vmatpush.msra.mxu0 0.0
    %172 = vmatpush.msra.mxu0 0.0
    %173 = vmatpush.msra.mxu0 0.0
    %174 = vmatpush.msra.mxu0 0.0
    %175 = vmatpush.msra.mxu0 0.0
    %176 = vmatpush.msra.mxu0 0.0
    %177 = vmatpush.msra.mxu0 0.0
    %178 = vmatpush.msra.mxu0 0.0
    %179 = vmatpush.msra.mxu0 0.0
    %180 = vmatpush.msra.mxu0 0.0
    %181 = vmatpush.msra.mxu0 0.0
    %182 = vmatpush.msra.mxu0 0.0
    %183 = vmatpush.msra.mxu0 %v129
    %184 = vmatpush.msra.mxu0 %v128
    %185 = vmatpush.msra.mxu0 %v127
    %186 = vmatpush.msra.mxu0 %v126
    %187 = vmatmul.f32.gmra.mxu0 %v160
    %v188 = vpop.f32.mrf.mxu0
    %v189 = vadd.f32 %v141, %v188
    %190 = vmatmul.f32.gmra.mxu0 %v163
    %v191 = vpop.f32.mrf.mxu0
    %v192 = vadd.f32 %v146, %v191
    %193 = vmatmul.f32.gmra.mxu0 %v166
    %v194 = vpop.f32.mrf.mxu0
    %v195 = vadd.f32 %v151, %v194
    %196 = vmatmul.f32.gmra.mxu0 %v169
    %v197 = vpop.f32.mrf.mxu0
    %v198 = vadd.f32 %v156, %v197
    %199 = vdwg.mxu0
    %v200 = vtanh.pop %v189
    %v201 = vtanh.pop %v192
    %v202 = vtanh.pop %v195
    %v203 = vtanh.pop %v198
    %v204 = vld [vmem:[%s6] sm:$0xff]
    %v205 = vld [vmem:[%s6 + $0x8] sm:$0xff]
    %v206 = vld [vmem:[%s6 + $0x10] sm:$0xff]
    %v207 = vld [vmem:[%s6 + $0x18] sm:$0xff]
    %v208 = vld [vmem:[%s7] sm:$0xff]
    %v209 = vld [vmem:[%s7 + $0x8] sm:$0xff]
    %v210 = vld [vmem:[%s7 + $0x10] sm:$0xff]
    %v211 = vld [vmem:[%s7 + $0x18] sm:$0xff]
    %213 = vset.pattern.permute.xlu0 0
    %214 = vperm.xlu0 %213, %v208
    %v215 = vpop.permute.xlu0 %214
    %218 = vset.pattern.permute.xlu0 0
    %219 = vperm.xlu0 %218, %v209
    %v220 = vpop.permute.xlu0 %219
    %223 = vset.pattern.permute.xlu0 0
    %224 = vperm.xlu0 %223, %v210
    %v225 = vpop.permute.xlu0 %224
    %228 = vset.pattern.permute.xlu0 0
    %229 = vperm.xlu0 %228, %v211
    %v230 = vpop.permute.xlu0 %229
    %v233 = vsel %vm158, %v204, 0
    %v236 = vsel %vm158, %v205, 0
    %v239 = vsel %vm158, %v206, 0
    %v242 = vsel %vm158, %v207, 0
    %244 = vmatpush.msra.mxu0 0.0
    %245 = vmatpush.msra.mxu0 0.0
    %246 = vmatpush.msra.mxu0 0.0
    %247 = vmatpush.msra.mxu0 0.0
    %248 = vmatpush.msra.mxu0 0.0
    %249 = vmatpush.msra.mxu0 0.0
    %250 = vmatpush.msra.mxu0 0.0
    %251 = vmatpush.msra.mxu0 0.0
    %252 = vmatpush.msra.mxu0 0.0
    %253 = vmatpush.msra.mxu0 0.0
    %254 = vmatpush.msra.mxu0 0.0
    %255 = vmatpush.msra.mxu0 0.0
    %256 = vmatpush.msra.mxu0 %v203
    %257 = vmatpush.msra.mxu0 %v202
    %258 = vmatpush.msra.mxu0 %v201
    %259 = vmatpush.msra.mxu0 %v200
    %260 = vmatmul.f32.gmra.mxu0 %v233
    %v261 = vpop.f32.mrf.mxu0
    %v262 = vadd.f32 %v215, %v261
    %263 = vmatmul.f32.gmra.mxu0 %v236
    %v264 = vpop.f32.mrf.mxu0
    %v265 = vadd.f32 %v220, %v264
    %266 = vmatmul.f32.gmra.mxu0 %v239
    %v267 = vpop.f32.mrf.mxu0
    %v268 = vadd.f32 %v225, %v267
    %269 = vmatmul.f32.gmra.mxu0 %v242
    %v270 = vpop.f32.mrf.mxu0
    %v271 = vadd.f32 %v230, %v270
    %272 = vdwg.mxu0
    %v273 = vtanh.pop %v262
    %v274 = vtanh.pop %v265
    %v275 = vtanh.pop %v268
    %v276 = vtanh.pop %v271
    %v277 = vld [vmem:[%s8] sm:$0xff]
    %v278 = vld [vmem:[%s8 + $0x8] sm:$0xff]
    %v279 = vld [vmem:[%s8 + $0x10] sm:$0xff]
    %v280 = vld [vmem:[%s8 + $0x18] sm:$0xff]
    %v281 = vld [vmem:[%s9] sm:$0xff]
    %v282 = vld [vmem:[%s9 + $0x8] sm:$0xff]
    %v283 = vld [vmem:[%s9 + $0x10] sm:$0xff]
    %v284 = vld [vmem:[%s9 + $0x18] sm:$0xff]
    %286 = vset.pattern.permute.xlu0 0
    %287 = vperm.xlu0 %286, %v281
    %v288 = vpop.permute.xlu0 %287
    %291 = vset.pattern.permute.xlu0 0
    %292 = vperm.xlu0 %291, %v282
    %v293 = vpop.permute.xlu0 %292
    %296 = vset.pattern.permute.xlu0 0
    %297 = vperm.xlu0 %296, %v283
    %v298 = vpop.permute.xlu0 %297
    %301 = vset.pattern.permute.xlu0 0
    %302 = vperm.xlu0 %301, %v284
    %v303 = vpop.permute.xlu0 %302
    %v306 = vsel %vm158, %v277, 0
    %v309 = vsel %vm158, %v278, 0
    %v312 = vsel %vm158, %v279, 0
    %v315 = vsel %vm158, %v280, 0
    %317 = vmatpush.msra.mxu0 0.0
    %318 = vmatpush.msra.mxu0 0.0
    %319 = vmatpush.msra.mxu0 0.0
    %320 = vmatpush.msra.mxu0 0.0
    %321 = vmatpush.msra.mxu0 0.0
    %322 = vmatpush.msra.mxu0 0.0
    %323 = vmatpush.msra.mxu0 0.0
    %324 = vmatpush.msra.mxu0 0.0
    %325 = vmatpush.msra.mxu0 0.0
    %326 = vmatpush.msra.mxu0 0.0
    %327 = vmatpush.msra.mxu0 0.0
    %328 = vmatpush.msra.mxu0 0.0
    %329 = vmatpush.msra.mxu0 %v276
    %330 = vmatpush.msra.mxu0 %v275
    %331 = vmatpush.msra.mxu0 %v274
    %332 = vmatpush.msra.mxu0 %v273
    %333 = vmatmul.f32.gmra.mxu0 %v306
    %v334 = vpop.f32.mrf.mxu0
    %v335 = vadd.f32 %v288, %v334
    %336 = vmatmul.f32.gmra.mxu0 %v309
    %v337 = vpop.f32.mrf.mxu0
    %v338 = vadd.f32 %v293, %v337
    %339 = vmatmul.f32.gmra.mxu0 %v312
    %v340 = vpop.f32.mrf.mxu0
    %v341 = vadd.f32 %v298, %v340
    %342 = vmatmul.f32.gmra.mxu0 %v315
    %v343 = vpop.f32.mrf.mxu0
    %v344 = vadd.f32 %v303, %v343
    %345 = vdwg.mxu0
    %v346 = vtanh.pop %v335
    %v347 = vtanh.pop %v338
    %v348 = vtanh.pop %v341
    %v349 = vtanh.pop %v344
    %v350 = vld [vmem:[%s1] sm:$0xff]
    %v351 = vld [vmem:[%s1 + $0x8] sm:$0xff]
    %v352 = vld [vmem:[%s1 + $0x10] sm:$0xff]
    %v353 = vld [vmem:[%s1 + $0x18] sm:$0xff]
    %v354 = vld [vmem:[%s10] sm:$0xff]
    %v355 = vld [vmem:[%s10 + $0x8] sm:$0xff]
    %v356 = vld [vmem:[%s10 + $0x10] sm:$0xff]
    %v357 = vld [vmem:[%s10 + $0x18] sm:$0xff]
    %v359 = vsel %vm158, %v354, 0
    %v362 = vsel %vm158, %v355, 0
    %v365 = vsel %vm158, %v356, 0
    %v368 = vsel %vm158, %v357, 0
    %370 = vmatpush.msra.mxu0 0.0
    %371 = vmatpush.msra.mxu0 0.0
    %372 = vmatpush.msra.mxu0 0.0
    %373 = vmatpush.msra.mxu0 0.0
    %374 = vmatpush.msra.mxu0 0.0
    %375 = vmatpush.msra.mxu0 0.0
    %376 = vmatpush.msra.mxu0 0.0
    %377 = vmatpush.msra.mxu0 0.0
    %378 = vmatpush.msra.mxu0 0.0
    %379 = vmatpush.msra.mxu0 0.0
    %380 = vmatpush.msra.mxu0 0.0
    %381 = vmatpush.msra.mxu0 0.0
    %382 = vmatpush.msra.mxu0 %v353
    %383 = vmatpush.msra.mxu0 %v352
    %384 = vmatpush.msra.mxu0 %v351
    %385 = vmatpush.msra.mxu0 %v350
    %386 = vmatmul.f32.gmra.mxu0 %v359
    %v387 = vpop.f32.mrf.mxu0
    %v388 = vadd.f32 0.0, %v387
    %389 = vmatmul.f32.gmra.mxu0 %v362
    %v390 = vpop.f32.mrf.mxu0
    %v391 = vadd.f32 0.0, %v390
    %392 = vmatmul.f32.gmra.mxu0 %v365
    %v393 = vpop.f32.mrf.mxu0
    %v394 = vadd.f32 0.0, %v393
    %395 = vmatmul.f32.gmra.mxu0 %v368
    %v396 = vpop.f32.mrf.mxu0
    %v397 = vadd.f32 0.0, %v396
    %398 = vdwg.mxu0
    %v399 = vmul.f32 %v388, %v346
    %v400 = vmul.f32 %v391, %v347
    %v401 = vmul.f32 %v394, %v348
    %v402 = vmul.f32 %v397, %v349
    %vm403 = vcmask 130048
    %v404 = vsel %vm403, %v399, 0.0
    %v405 = vsel %vm403, %v400, 0.0
    %v406 = vadd.f32 %v404, %v405
    %v407 = vsel %vm403, %v401, 0.0
    %v408 = vadd.f32 %v406, %v407
    %v409 = vsel %vm403, %v402, 0.0
    %v410 = vadd.f32 %v408, %v409
    %v411 = vrot.slane %v410, 4
    %v412 = vadd.f32 %v410, %v411
    %v413 = vrot.slane %v412, 2
    %v414 = vadd.f32 %v412, %v413
    %v415 = vrot.slane %v414, 1
    %v416 = vadd.f32 %v414, %v415
    %v417 = vld [vmem:[%s11] sm:$0xff]
    %v418 = vld [vmem:[%s11 + $0x8] sm:$0xff]
    %v419 = vld [vmem:[%s11 + $0x10] sm:$0xff]
    %v420 = vld [vmem:[%s11 + $0x18] sm:$0xff]
    %422 = vset.pattern.permute.xlu0 0
    %423 = vperm.xlu0 %422, %v417
    %v424 = vpop.permute.xlu0 %423
    %427 = vset.pattern.permute.xlu0 0
    %428 = vperm.xlu0 %427, %v418
    %v429 = vpop.permute.xlu0 %428
    %432 = vset.pattern.permute.xlu0 0
    %433 = vperm.xlu0 %432, %v419
    %v434 = vpop.permute.xlu0 %433
    %437 = vset.pattern.permute.xlu0 0
    %438 = vperm.xlu0 %437, %v420
    %v439 = vpop.permute.xlu0 %438
    %v441 = vmul.f32 %v350, %v424
    %v442 = vmul.f32 %v351, %v429
    %v443 = vmul.f32 %v352, %v434
    %v444 = vmul.f32 %v353, %v439
    %v445 = vsel %vm403, %v441, 0.0
    %v446 = vsel %vm403, %v442, 0.0
    %v447 = vadd.f32 %v445, %v446
    %v448 = vsel %vm403, %v443, 0.0
    %v449 = vadd.f32 %v447, %v448
    %v450 = vsel %vm403, %v444, 0.0
    %v451 = vadd.f32 %v449, %v450
    %v452 = vrot.slane %v451, 4
    %v453 = vadd.f32 %v451, %v452
    %v454 = vrot.slane %v453, 2
    %v455 = vadd.f32 %v453, %v454
    %v456 = vrot.slane %v455, 1
    %v457 = vadd.f32 %v455, %v456
    %v458 = vadd.f32 %v416, %v457
    %vm459 = vcmask 122880
    %460 = vst.msk [vmem:[#allocation2] sm:$0x1] %vm459, %v458
    // Predicated region
    $region50: #{deeponet_forward.1} parent=1 // pred_check
      _
    $region51: #{deeponet_forward.1} parent=1 // pred_check_branch
      %462 = sbr.rel (0) target = $region53
    $region52: #{deeponet_forward.1} parent=1 // pred_region
      %464 = vsyncadd [#allocation3], 0
      %s466 = sshll.u32 [#allocation2], 4
      %s467 = int_to_ptr.vmem [resolvable:$true] %s466
      %s468 = sshll.u32 %s12, 4
      %s469 = int_to_ptr.hbm [resolvable:$true] %s468
      %471 = dma.vmem_to_hbm [thread:$0]  %s467, 16, %s469, [#allocation3]
    $region53: #{deeponet_forward.1} parent=1 // pred_fallthru
      _
    // Predicated region
    $region54: #{deeponet_forward.1} parent=1 // pred_check
      _
    $region55: #{deeponet_forward.1} parent=1 // pred_check_branch
      %473 = sbr.rel (0) target = $region57
    $region56: #{deeponet_forward.1} parent=1 // pred_region
      %475 = dma.done [#allocation3], 16
    $region57: #{deeponet_forward.1} parent=1 // pred_fallthru
      _
    %476 = vsyncpa [#allocation3], 1

</llo_original>
